<compile_context>
chip_gen: v7x
topology: tpu7x:2x2x1
jax: 0.10.0
libtpu: 0.0.40
codegen_flags: <defaults>
</compile_context>

<pallas_src>
import functools

import jax
import jax.numpy as jnp
from jax import lax
from jax.experimental import pallas as pl
from jax.experimental.pallas import tpu as pltpu

_KBLOCK = 8            # harmonics per block; exact cos/sin resync at each block start
_MAX_STATIC_BLOCKS = 8  # K <= 64 -> static unroll; larger K -> fori_loop over blocks


def _round_up(x, m):
    return ((x + m - 1) // m) * m


def _kan_fourier_kernel(x_ref, w_ref, b_ref, cosw_ref, sinw_ref, o_ref, xp_ref,
                        *, k_pad, strip_rows):
    """Computes one (bt, tn) output tile.

    x_ref    (bt, F_in)   input rows (streamed)
    w_ref    (F_in, tn)   alpha_weights column block (resident across inner steps)
    b_ref    (1, tn)      alpha_bias block           (resident)
    cosw_ref (k_pad, tn)  Fourier cos coefficients   (resident, zero-padded rows)
    sinw_ref (k_pad, tn)  Fourier sin coefficients   (resident, zero-padded rows)
    o_ref    (bt, tn)     output tile
    xp_ref   (bt, tn)     VMEM scratch for x' = x @ W (f32)
    """
    bt, tn = o_ref.shape
    n_blocks = k_pad // _KBLOCK
    n_strips = bt // strip_rows

    # Linear part on the MXU once for the whole tile (f32 accumulate).
    xp_ref[...] = jnp.dot(x_ref[...], w_ref[...], preferred_element_type=jnp.float32)

    bias = b_ref[...]  # (1, tn), hoisted out of the strip loop

    def coeff(ref, k):  # one coefficient row, (1, tn)
        return ref[pl.ds(k, 1), :]

    def strip_body(s, carry):
        r0 = pl.multiple_of(s * strip_rows, strip_rows)
        xps = xp_ref[pl.ds(r0, strip_rows), :] + bias       # (SR, tn), register-resident

        # Fundamental harmonic: only 2 unconditional transcendentals per element.
        c1 = jnp.cos(xps)
        s1 = jnp.sin(xps)
        two_c1 = c1 + c1

        def run_block(acc, m0, c_prev, s_prev, c_cur, s_cur):
            # harmonic m0 + 1
            acc = acc + coeff(cosw_ref, m0) * c_cur + coeff(sinw_ref, m0) * s_cur
            # harmonics m0+2 .. m0+_KBLOCK via second-order Chebyshev recurrence:
            #   c_{k+1} = 2*c1*c_k - c_{k-1}   (4 VALU ops/harmonic vs 6 for angle-add)
            for j in range(1, _KBLOCK):
                c_new = two_c1 * c_cur - c_prev
                s_new = two_c1 * s_cur - s_prev
                c_prev, s_prev, c_cur, s_cur = c_cur, s_cur, c_new, s_new
                acc = (acc
                       + coeff(cosw_ref, m0 + j) * c_new
                       + coeff(sinw_ref, m0 + j) * s_new)
            return acc

        # Block 0 starts from exact (cos 0, sin 0) = (1, 0) and (c1, s1).
        acc = run_block(jnp.zeros_like(xps), 0,
                        jnp.ones_like(xps), jnp.zeros_like(xps), c1, s1)

        if n_blocks > 1:
            def later_block(acc, m0, m0_f):
                # Resync: exact cos/sin at the block start bounds Chebyshev fp drift
                # to <= _KBLOCK-1 recurrence steps.
                c_prev = jnp.cos(m0_f * xps)
                s_prev = jnp.sin(m0_f * xps)
                ang1 = (m0_f + 1.0) * xps
                c_cur = jnp.cos(ang1)
                s_cur = jnp.sin(ang1)
                return run_block(acc, m0, c_prev, s_prev, c_cur, s_cur)

            if n_blocks <= _MAX_STATIC_BLOCKS:
                for b in range(1, n_blocks):  # static unroll for realistic K (<= 64)
                    acc = later_block(acc, b * _KBLOCK, jnp.float32(b * _KBLOCK))
            else:
                def fori_body(b, acc):
                    m0 = b * _KBLOCK
                    return later_block(acc, m0, m0.astype(jnp.float32))
                acc = lax.fori_loop(1, n_blocks, fori_body, acc)

        o_ref[pl.ds(r0, strip_rows), :] = acc.astype(o_ref.dtype)
        return carry

    lax.fori_loop(0, n_strips, strip_body, None)


def kan_layer_forward(
    x,
    alpha_weights,
    alpha_bias,
    cos_w,
    sin_w,
    *,
    batch_tile=256,
    out_tile=512,
    out_dtype=None,
    vmem_limit_bytes=None,
):
    """Pallas KANLayer forward.

    x:             (B, F_in)      float32
    alpha_weights: (F_in, F_out)  float32
    alpha_bias:    (F_out,)       float32
    cos_w, sin_w:  (K, F_out)     float32   (Fourier basis coefficients)
    returns:       (B, F_out)     out_dtype (default: x.dtype)
    """
    B, F_in = x.shape
    F_in_w, F_out = alpha_weights.shape
    assert F_in == F_in_w
    K = cos_w.shape[0]
    assert cos_w.shape == sin_w.shape == (K, F_out)
    out_dtype = x.dtype if out_dtype is None else out_dtype

    # --- Tiling choices ----------------------------------------------------------
    # Lane-dense output: pad F_out to a multiple of 128 so stores are unmasked vst.
    F_out_p = _round_up(F_out, 128)
    # F_out tile: largest multiple of 128 that divides F_out_p and is <= out_tile.
    tn_cap = min(_round_up(out_tile, 128), F_out_p)
    tn = 128
    for cand in range(tn_cap, 127, -128):
        if F_out_p % cand == 0:
            tn = cand
            break

    # Batch tile: multiple of 8 sublanes; ragged batches handled by zero-padding.
    bt = _round_up(min(batch_tile, _round_up(B, 8)), 8)
    # v7x has 2 TensorCores: keep >= 2 batch-tile iterations when B allows so the
    # megacore-sharded ("parallel") axis has balanced work.
    if _round_up(B, 8) > 8 and _round_up(B, bt) // bt < 2:
        bt = _round_up(-(-B // 2), 8)
    B_p = _round_up(B, bt)

    # Strip rows: keep per-strip f32 arrays small enough (~4 vregs each) that the
    # Fourier recurrence stays register-resident (64 vregs of (8,128)x32b).
    strip_rows = max(8, min(32, 8 * max(1, 512 // tn)))
    while bt % strip_rows:
        strip_rows //= 2

    # Pad K to a multiple of _KBLOCK with zero coefficient rows (zero contribution).
    K_pad = _round_up(K, _KBLOCK)

    # --- Padding -----------------------------------------------------------------
    xp = x if B_p == B else jnp.pad(x, ((0, B_p - B), (0, 0)))
    pad_n = F_out_p - F_out
    pad_k = K_pad - K
    if pad_n:
        alpha_weights = jnp.pad(alpha_weights, ((0, 0), (0, pad_n)))
        alpha_bias = jnp.pad(alpha_bias, ((0, pad_n),))
    if pad_n or pad_k:
        cos_w = jnp.pad(cos_w, ((0, pad_k), (0, pad_n)))
        sin_w = jnp.pad(sin_w, ((0, pad_k), (0, pad_n)))
    bias2d = alpha_bias.reshape(1, F_out_p)

    n_i = B_p // bt        # batch tiles
    n_j = F_out_p // tn    # output-feature tiles

    # --- VMEM budget (generation-aware: v7x 64 MiB physical, v5e/v6e 128 MiB) -----
    if vmem_limit_bytes is None:
        try:
            phys = int(pltpu.get_tpu_info().vmem_capacity_bytes)
        except Exception:
            phys = 64 * 1024 * 1024
        cap = int(phys * 0.65)
        resident = (F_in * tn + tn + 2 * K_pad * tn) * 4     # W / bias / cos / sin blocks
        streamed = (2 * bt * F_in + 2 * bt * tn) * 4         # double-buffered x / out tiles
        scratch = bt * tn * 4                                # x' staging
        need = 2 * resident + streamed + scratch + (4 << 20)  # + compiler internal scratch
        vmem_limit_bytes = max(16 << 20, min(int(1.25 * need), cap))

    kernel = functools.partial(_kan_fourier_kernel, k_pad=K_pad, strip_rows=strip_rows)

    # Grid order: keep the weight/bias/coefficient block index constant along the
    # innermost grid axis so Pallas fetches those blocks once and reuses them
    # (no per-step re-DMA); only x / out tiles stream from HBM.
    if n_j == 1:
        grid = (n_i, 1)
        in_specs = [
            pl.BlockSpec((bt, F_in), lambda i, j: (i, 0)),     # x tile (streamed)
            pl.BlockSpec((F_in, tn), lambda i, j: (0, 0)),     # weights (resident)
            pl.BlockSpec((1, tn), lambda i, j: (0, 0)),        # bias (resident)
            pl.BlockSpec((K_pad, tn), lambda i, j: (0, 0)),    # cos coeffs (resident)
            pl.BlockSpec((K_pad, tn), lambda i, j: (0, 0)),    # sin coeffs (resident)
        ]
        out_specs = pl.BlockSpec((bt, tn), lambda i, j: (i, 0))
    else:
        grid = (n_j, n_i)  # batch innermost -> W/coeffs resident per outer j step
        in_specs = [
            pl.BlockSpec((bt, F_in), lambda j, i: (i, 0)),
            pl.BlockSpec((F_in, tn), lambda j, i: (0, j)),
            pl.BlockSpec((1, tn), lambda j, i: (0, j)),
            pl.BlockSpec((K_pad, tn), lambda j, i: (0, j)),
            pl.BlockSpec((K_pad, tn), lambda j, i: (0, j)),
        ]
        out_specs = pl.BlockSpec((bt, tn), lambda j, i: (i, j))

    out = pl.pallas_call(
        kernel,
        out_shape=jax.ShapeDtypeStruct((B_p, F_out_p), out_dtype),
        grid_spec=pltpu.PrefetchScalarGridSpec(
            num_scalar_prefetch=0,
            grid=grid,
            in_specs=in_specs,
            out_specs=out_specs,
            scratch_shapes=[pltpu.VMEM((bt, tn), jnp.float32)],
        ),
        compiler_params=pltpu.CompilerParams(
            dimension_semantics=("parallel", "parallel"),
            vmem_limit_bytes=vmem_limit_bytes,
        ),
    )(xp, alpha_weights, bias2d, cos_w, sin_w)

    if B_p == B and F_out_p == F_out:
        return out
    return out[:B, :F_out]


def kan_layer_reference(x, alpha_weights, alpha_bias, cos_w, sin_w):
    """Pure-JAX reference mirroring the PyTorch forward."""
    x_prime = x @ alpha_weights + alpha_bias               # (B, F_out)
    K = cos_w.shape[0]
    freqs = jnp.arange(1, K + 1, dtype=jnp.float32)        # (K,)
    ang = freqs[None, :, None] * x_prime[:, None, :]       # (B, K, F_out)
    out = jnp.sum(
        cos_w[None, :, :] * jnp.cos(ang) + sin_w[None, :, :] * jnp.sin(ang), axis=1
    )
    return out


if __name__ == "__main__":
    # Small, deterministic setup consistent with KANLayer(in_features, out_features).
    B, F_IN, F_OUT, K = 8, 4, 32, 5

    key = jax.random.PRNGKey(0)
    k_x, k_w, k_cos, k_sin = jax.random.split(key, 4)

    x = jax.random.normal(k_x, (B, F_IN), dtype=jnp.float32)

    # Parameter init mirroring __init__: randn * 0.1 for alpha_weights, zeros for bias.
    alpha_weights = 0.1 * jax.random.normal(k_w, (F_IN, F_OUT), dtype=jnp.float32)
    alpha_bias = jnp.zeros((F_OUT,), dtype=jnp.float32)
    # Fourier basis coefficients (synthetic, deterministic).
    cos_w = 0.1 * jax.random.normal(k_cos, (K, F_OUT), dtype=jnp.float32)
    sin_w = 0.1 * jax.random.normal(k_sin, (K, F_OUT), dtype=jnp.float32)

    out = kan_layer_forward(x, alpha_weights, alpha_bias, cos_w, sin_w)
    out = jax.block_until_ready(out)
    ref = kan_layer_reference(x, alpha_weights, alpha_bias, cos_w, sin_w)
    assert out.shape == (B, F_OUT)
    assert jnp.allclose(out, ref, atol=1e-5, rtol=1e-5), "mismatch vs reference"

    # Ragged / larger batch: exercises padding + multiple batch tiles.
    Bl = 300
    xl = jax.random.normal(jax.random.PRNGKey(1), (Bl, F_IN), dtype=jnp.float32)
    out_l = jax.block_until_ready(
        kan_layer_forward(xl, alpha_weights, alpha_bias, cos_w, sin_w, batch_tile=128)
    )
    ref_l = kan_layer_reference(xl, alpha_weights, alpha_bias, cos_w, sin_w)
    assert out_l.shape == (Bl, F_OUT)
    assert jnp.allclose(out_l, ref_l, atol=1e-5, rtol=1e-5), "ragged mismatch vs reference"

    # Large-K + tiled F_out: exercises the flipped (resident-weight) grid order and the
    # dynamic (fori_loop) harmonic-block path.
    B3, F_OUT3, K3 = 64, 300, 72
    kk = jax.random.split(jax.random.PRNGKey(2), 5)
    x3 = jax.random.normal(kk[0], (B3, F_IN), dtype=jnp.float32)
    w3 = 0.1 * jax.random.normal(kk[1], (F_IN, F_OUT3), dtype=jnp.float32)
    b3 = 0.05 * jax.random.normal(kk[2], (F_OUT3,), dtype=jnp.float32)
    cw3 = 0.1 * jax.random.normal(kk[3], (K3, F_OUT3), dtype=jnp.float32)
    sw3 = 0.1 * jax.random.normal(kk[4], (K3, F_OUT3), dtype=jnp.float32)
    out3 = jax.block_until_ready(
        kan_layer_forward(x3, w3, b3, cw3, sw3, batch_tile=32, out_tile=128)
    )
    ref3 = kan_layer_reference(x3, w3, b3, cw3, sw3)
    assert out3.shape == (B3, F_OUT3)
    assert jnp.allclose(out3, ref3, atol=5e-5, rtol=5e-5), "large-K mismatch vs reference"

    print("KERNEL_OK")
</pallas_src>

<mosaic_0001>
module attributes {stable_mosaic.version = 11 : i64} {
  func.func @_kan_fourier_kernel(%arg0: i32, %arg1: i32, %arg2: memref<8x4xf32, #tpu.memory_space<vmem>>, %arg3: memref<4x128xf32, #tpu.memory_space<vmem>>, %arg4: memref<1x128xf32, #tpu.memory_space<vmem>>, %arg5: memref<8x128xf32, #tpu.memory_space<vmem>>, %arg6: memref<8x128xf32, #tpu.memory_space<vmem>>, %arg7: memref<8x128xf32, #tpu.memory_space<vmem>>, %arg8: memref<8x128xf32, #tpu.memory_space<vmem>>) attributes {dimension_semantics = [#tpu.dimension_semantics<parallel>, #tpu.dimension_semantics<parallel>], iteration_bounds = array<i64: 1, 1>, scalar_prefetch = 0 : i64, scratch_operands = 1 : i64, tpu.core_type = #tpu.core_type<tc>, window_params = [{transform_indices = @transform_0, window_bounds = array<i64: 8, 4>}, {pipeline_mode = #tpu.pipeline_mode<synchronous>, transform_indices = @transform_1, window_bounds = array<i64: 4, 128>}, {pipeline_mode = #tpu.pipeline_mode<synchronous>, transform_indices = @transform_2, window_bounds = array<i64: 1, 128>}, {pipeline_mode = #tpu.pipeline_mode<synchronous>, transform_indices = @transform_3, window_bounds = array<i64: 8, 128>}, {pipeline_mode = #tpu.pipeline_mode<synchronous>, transform_indices = @transform_4, window_bounds = array<i64: 8, 128>}, {transform_indices = @transform_5, window_bounds = array<i64: 8, 128>}]} {
    %c0 = arith.constant 0 : index
    %c0_0 = arith.constant 0 : index
    %0 = vector.load %arg2[%c0, %c0_0] : memref<8x4xf32, #tpu.memory_space<vmem>>, vector<8x4xf32>
    %c0_1 = arith.constant 0 : index
    %c0_2 = arith.constant 0 : index
    %1 = vector.load %arg3[%c0_1, %c0_2] : memref<4x128xf32, #tpu.memory_space<vmem>>, vector<4x128xf32>
    %cst = arith.constant dense<0.000000e+00> : vector<8x128xf32>
    %2 = tpu.matmul %0, %1, %cst {dimension_numbers = #tpu.dot_dimension_numbers<[1], [0], [0], [1], [0, 0, 1, 1], [], []>} : vector<8x4xf32>, vector<4x128xf32>, vector<8x128xf32> -> vector<8x128xf32>
    %c0_3 = arith.constant 0 : index
    %c0_4 = arith.constant 0 : index
    %3 = vector.load %arg8[%c0_3, %c0_4] : memref<8x128xf32, #tpu.memory_space<vmem>>, vector<8x128xf32>
    tpu.vector_store %arg8[%c0_3, %c0_4], %2 {strides = array<i32>} : memref<8x128xf32, #tpu.memory_space<vmem>>, vector<8x128xf32>,
    %c0_5 = arith.constant 0 : index
    %c0_6 = arith.constant 0 : index
    %4 = vector.load %arg4[%c0_5, %c0_6] : memref<1x128xf32, #tpu.memory_space<vmem>>, vector<1x128xf32>
    %c0_i32 = arith.constant 0 : i32
    %c8_i32 = arith.constant 8 : i32
    %5 = arith.muli %c0_i32, %c8_i32 : i32
    %6 = tpu.assume_multiple %5, 8 : i32
    %7 = arith.index_cast %6 : i32 to index
    %c0_7 = arith.constant 0 : index
    %8 = vector.load %arg8[%7, %c0_7] : memref<8x128xf32, #tpu.memory_space<vmem>>, vector<8x128xf32>
    %9 = vector.broadcast %4 : vector<1x128xf32> to vector<8x128xf32>
    %10 = arith.addf %8, %9 : vector<8x128xf32>
    %11 = math.cos %10 : vector<8x128xf32>
    %12 = math.sin %10 : vector<8x128xf32>
    %13 = arith.addf %11, %11 : vector<8x128xf32>
    %cst_8 = arith.constant 0.000000e+00 : f32
    %14 = vector.broadcast %cst_8 : f32 to vector<8x128xf32>
    %cst_9 = arith.constant 1.000000e+00 : f32
    %15 = vector.broadcast %cst_9 : f32 to vector<8x128xf32>
    %cst_10 = arith.constant 0.000000e+00 : f32
    %16 = vector.broadcast %cst_10 : f32 to vector<8x128xf32>
    %c0_11 = arith.constant 0 : index
    %c0_12 = arith.constant 0 : index
    %17 = vector.load %arg5[%c0_11, %c0_12] : memref<8x128xf32, #tpu.memory_space<vmem>>, vector<1x128xf32>
    %18 = vector.broadcast %17 : vector<1x128xf32> to vector<8x128xf32>
    %19 = arith.mulf %18, %11 : vector<8x128xf32>
    %20 = arith.addf %14, %19 : vector<8x128xf32>
    %c0_13 = arith.constant 0 : index
    %c0_14 = arith.constant 0 : index
    %21 = vector.load %arg6[%c0_13, %c0_14] : memref<8x128xf32, #tpu.memory_space<vmem>>, vector<1x128xf32>
    %22 = vector.broadcast %21 : vector<1x128xf32> to vector<8x128xf32>
    %23 = arith.mulf %22, %12 : vector<8x128xf32>
    %24 = arith.addf %20, %23 : vector<8x128xf32>
    %25 = arith.mulf %13, %11 : vector<8x128xf32>
    %26 = arith.subf %25, %15 : vector<8x128xf32>
    %27 = arith.mulf %13, %12 : vector<8x128xf32>
    %28 = arith.subf %27, %16 : vector<8x128xf32>
    %c1 = arith.constant 1 : index
    %c0_15 = arith.constant 0 : index
    %29 = vector.load %arg5[%c1, %c0_15] : memref<8x128xf32, #tpu.memory_space<vmem>>, vector<1x128xf32>
    %30 = vector.broadcast %29 : vector<1x128xf32> to vector<8x128xf32>
    %31 = arith.mulf %30, %26 : vector<8x128xf32>
    %32 = arith.addf %24, %31 : vector<8x128xf32>
    %c1_16 = arith.constant 1 : index
    %c0_17 = arith.constant 0 : index
    %33 = vector.load %arg6[%c1_16, %c0_17] : memref<8x128xf32, #tpu.memory_space<vmem>>, vector<1x128xf32>
    %34 = vector.broadcast %33 : vector<1x128xf32> to vector<8x128xf32>
    %35 = arith.mulf %34, %28 : vector<8x128xf32>
    %36 = arith.addf %32, %35 : vector<8x128xf32>
    %37 = arith.mulf %13, %26 : vector<8x128xf32>
    %38 = arith.subf %37, %11 : vector<8x128xf32>
    %39 = arith.mulf %13, %28 : vector<8x128xf32>
    %40 = arith.subf %39, %12 : vector<8x128xf32>
    %c2 = arith.constant 2 : index
    %c0_18 = arith.constant 0 : index
    %41 = vector.load %arg5[%c2, %c0_18] : memref<8x128xf32, #tpu.memory_space<vmem>>, vector<1x128xf32>
    %42 = vector.broadcast %41 : vector<1x128xf32> to vector<8x128xf32>
    %43 = arith.mulf %42, %38 : vector<8x128xf32>
    %44 = arith.addf %36, %43 : vector<8x128xf32>
    %c2_19 = arith.constant 2 : index
    %c0_20 = arith.constant 0 : index
    %45 = vector.load %arg6[%c2_19, %c0_20] : memref<8x128xf32, #tpu.memory_space<vmem>>, vector<1x128xf32>
    %46 = vector.broadcast %45 : vector<1x128xf32> to vector<8x128xf32>
    %47 = arith.mulf %46, %40 : vector<8x128xf32>
    %48 = arith.addf %44, %47 : vector<8x128xf32>
    %49 = arith.mulf %13, %38 : vector<8x128xf32>
    %50 = arith.subf %49, %26 : vector<8x128xf32>
    %51 = arith.mulf %13, %40 : vector<8x128xf32>
    %52 = arith.subf %51, %28 : vector<8x128xf32>
    %c3 = arith.constant 3 : index
    %c0_21 = arith.constant 0 : index
    %53 = vector.load %arg5[%c3, %c0_21] : memref<8x128xf32, #tpu.memory_space<vmem>>, vector<1x128xf32>
    %54 = vector.broadcast %53 : vector<1x128xf32> to vector<8x128xf32>
    %55 = arith.mulf %54, %50 : vector<8x128xf32>
    %56 = arith.addf %48, %55 : vector<8x128xf32>
    %c3_22 = arith.constant 3 : index
    %c0_23 = arith.constant 0 : index
    %57 = vector.load %arg6[%c3_22, %c0_23] : memref<8x128xf32, #tpu.memory_space<vmem>>, vector<1x128xf32>
    %58 = vector.broadcast %57 : vector<1x128xf32> to vector<8x128xf32>
    %59 = arith.mulf %58, %52 : vector<8x128xf32>
    %60 = arith.addf %56, %59 : vector<8x128xf32>
    %61 = arith.mulf %13, %50 : vector<8x128xf32>
    %62 = arith.subf %61, %38 : vector<8x128xf32>
    %63 = arith.mulf %13, %52 : vector<8x128xf32>
    %64 = arith.subf %63, %40 : vector<8x128xf32>
    %c4 = arith.constant 4 : index
    %c0_24 = arith.constant 0 : index
    %65 = vector.load %arg5[%c4, %c0_24] : memref<8x128xf32, #tpu.memory_space<vmem>>, vector<1x128xf32>
    %66 = vector.broadcast %65 : vector<1x128xf32> to vector<8x128xf32>
    %67 = arith.mulf %66, %62 : vector<8x128xf32>
    %68 = arith.addf %60, %67 : vector<8x128xf32>
    %c4_25 = arith.constant 4 : index
    %c0_26 = arith.constant 0 : index
    %69 = vector.load %arg6[%c4_25, %c0_26] : memref<8x128xf32, #tpu.memory_space<vmem>>, vector<1x128xf32>
    %70 = vector.broadcast %69 : vector<1x128xf32> to vector<8x128xf32>
    %71 = arith.mulf %70, %64 : vector<8x128xf32>
    %72 = arith.addf %68, %71 : vector<8x128xf32>
    %73 = arith.mulf %13, %62 : vector<8x128xf32>
    %74 = arith.subf %73, %50 : vector<8x128xf32>
    %75 = arith.mulf %13, %64 : vector<8x128xf32>
    %76 = arith.subf %75, %52 : vector<8x128xf32>
    %c5 = arith.constant 5 : index
    %c0_27 = arith.constant 0 : index
    %77 = vector.load %arg5[%c5, %c0_27] : memref<8x128xf32, #tpu.memory_space<vmem>>, vector<1x128xf32>
    %78 = vector.broadcast %77 : vector<1x128xf32> to vector<8x128xf32>
    %79 = arith.mulf %78, %74 : vector<8x128xf32>
    %80 = arith.addf %72, %79 : vector<8x128xf32>
    %c5_28 = arith.constant 5 : index
    %c0_29 = arith.constant 0 : index
    %81 = vector.load %arg6[%c5_28, %c0_29] : memref<8x128xf32, #tpu.memory_space<vmem>>, vector<1x128xf32>
    %82 = vector.broadcast %81 : vector<1x128xf32> to vector<8x128xf32>
    %83 = arith.mulf %82, %76 : vector<8x128xf32>
    %84 = arith.addf %80, %83 : vector<8x128xf32>
    %85 = arith.mulf %13, %74 : vector<8x128xf32>
    %86 = arith.subf %85, %62 : vector<8x128xf32>
    %87 = arith.mulf %13, %76 : vector<8x128xf32>
    %88 = arith.subf %87, %64 : vector<8x128xf32>
    %c6 = arith.constant 6 : index
    %c0_30 = arith.constant 0 : index
    %89 = vector.load %arg5[%c6, %c0_30] : memref<8x128xf32, #tpu.memory_space<vmem>>, vector<1x128xf32>
    %90 = vector.broadcast %89 : vector<1x128xf32> to vector<8x128xf32>
    %91 = arith.mulf %90, %86 : vector<8x128xf32>
    %92 = arith.addf %84, %91 : vector<8x128xf32>
    %c6_31 = arith.constant 6 : index
    %c0_32 = arith.constant 0 : index
    %93 = vector.load %arg6[%c6_31, %c0_32] : memref<8x128xf32, #tpu.memory_space<vmem>>, vector<1x128xf32>
    %94 = vector.broadcast %93 : vector<1x128xf32> to vector<8x128xf32>
    %95 = arith.mulf %94, %88 : vector<8x128xf32>
    %96 = arith.addf %92, %95 : vector<8x128xf32>
    %97 = arith.mulf %13, %86 : vector<8x128xf32>
    %98 = arith.subf %97, %74 : vector<8x128xf32>
    %99 = arith.mulf %13, %88 : vector<8x128xf32>
    %100 = arith.subf %99, %76 : vector<8x128xf32>
    %c7 = arith.constant 7 : index
    %c0_33 = arith.constant 0 : index
    %101 = vector.load %arg5[%c7, %c0_33] : memref<8x128xf32, #tpu.memory_space<vmem>>, vector<1x128xf32>
    %102 = vector.broadcast %101 : vector<1x128xf32> to vector<8x128xf32>
    %103 = arith.mulf %102, %98 : vector<8x128xf32>
    %104 = arith.addf %96, %103 : vector<8x128xf32>
    %c7_34 = arith.constant 7 : index
    %c0_35 = arith.constant 0 : index
    %105 = vector.load %arg6[%c7_34, %c0_35] : memref<8x128xf32, #tpu.memory_space<vmem>>, vector<1x128xf32>
    %106 = vector.broadcast %105 : vector<1x128xf32> to vector<8x128xf32>
    %107 = arith.mulf %106, %100 : vector<8x128xf32>
    %108 = arith.addf %104, %107 : vector<8x128xf32>
    %109 = arith.index_cast %6 : i32 to index
    %c0_36 = arith.constant 0 : index
    %110 = vector.load %arg7[%109, %c0_36] : memref<8x128xf32, #tpu.memory_space<vmem>>, vector<8x128xf32>
    tpu.vector_store %arg7[%109, %c0_36], %108 {strides = array<i32>} : memref<8x128xf32, #tpu.memory_space<vmem>>, vector<8x128xf32>,
    %c1_i32 = arith.constant 1 : i32
    return
  }
  func.func @transform_0(%arg0: i32, %arg1: i32) -> (i32, i32) {
    %c0_i32 = arith.constant 0 : i32
    %c0_i32_0 = arith.constant 0 : i32
    return %arg0, %c0_i32 : i32, i32
  }
  func.func @transform_1(%arg0: i32, %arg1: i32) -> (i32, i32) {
    %c0_i32 = arith.constant 0 : i32
    %c0_i32_0 = arith.constant 0 : i32
    %c0_i32_1 = arith.constant 0 : i32
    return %c0_i32, %c0_i32_0 : i32, i32
  }
  func.func @transform_2(%arg0: i32, %arg1: i32) -> (i32, i32) {
    %c0_i32 = arith.constant 0 : i32
    %c0_i32_0 = arith.constant 0 : i32
    %c0_i32_1 = arith.constant 0 : i32
    return %c0_i32, %c0_i32_0 : i32, i32
  }
  func.func @transform_3(%arg0: i32, %arg1: i32) -> (i32, i32) {
    %c0_i32 = arith.constant 0 : i32
    %c0_i32_0 = arith.constant 0 : i32
    %c0_i32_1 = arith.constant 0 : i32
    return %c0_i32, %c0_i32_0 : i32, i32
  }
  func.func @transform_4(%arg0: i32, %arg1: i32) -> (i32, i32) {
    %c0_i32 = arith.constant 0 : i32
    %c0_i32_0 = arith.constant 0 : i32
    %c0_i32_1 = arith.constant 0 : i32
    return %c0_i32, %c0_i32_0 : i32, i32
  }
  func.func @transform_5(%arg0: i32, %arg1: i32) -> (i32, i32) {
    %c0_i32 = arith.constant 0 : i32
    %c0_i32_0 = arith.constant 0 : i32
    return %arg0, %c0_i32 : i32, i32
  }
}

</mosaic_0001>

<llo_original>
// kernel: tpu_custom_call.1
$region0: #{tpu_custom_call.1}
  #allocation0 [shape = 'u32[]', space=smem, size = 0x4, offset = 0x4, fixed_abs, tag = 'smem constant byte address 0x4 - core index']
  #allocation1 [shape = 'u32[144,128]{1,0:T(1,128)}', space=vmem, size = 0x12000, scoped, tag = 'internal scratch']
  #allocation2 [shape = 'f32[8,128]{1,0:T(8,128)}', space=vmem, size = 0x1000, scoped, tag = 'scratch operand']
  %s0 = inlined_call_operand.vmem [shape: f32[8,4], index: 0, kind: input, shape index: {}]
  %s1 = inlined_call_operand.hbm [shape: f32[4,128], index: 1, kind: input, shape index: {}]
  %s2 = inlined_call_operand.vmem [shape: f32[1,128], index: 2, kind: input, shape index: {}]
  %s3 = inlined_call_operand.vmem [shape: f32[8,128], index: 3, kind: input, shape index: {}]
  %s4 = inlined_call_operand.vmem [shape: f32[8,128], index: 4, kind: input, shape index: {}]
  %s5 = inlined_call_operand.hbm [shape: f32[8,128], index: 5, kind: output, shape index: {}]
  %s6 = sld [smem:[#allocation0]]
  $region34: #{tpu_custom_call.1} parent=0
    _
  %s8 = ssub.s32 1, %s6
  %s9 = scalar_select 0, %s8, %s6
  $region1: #{tpu_custom_call.1} parent=0
    #allocation3 [shape = 'u8[2048]{0}', space=vmem, size = 0x800, scoped, tag = 'input window, operand 1, single buffered']
    #allocation4 [shape = 's32[1]{0}', space=sflag, size = 0x4, scoped, tag = 'scoped memory for tpu_custom_call.1']
    #allocation5 [shape = 's32[1]{0}', space=sflag, size = 0x4, scoped, tag = 'scoped memory for tpu_custom_call.1']
    #allocation6 [shape = 'u8[4096]{0}', space=vmem, size = 0x1000, scoped, tag = 'output window, operand 0, single buffered']
    %10 = vsyncpa [#allocation4], 0
    %11 = vsyncpa [#allocation5], 0
    // Predicated region
    $region2: #{tpu_custom_call.1} parent=1 // pred_check
      _
    $region3: #{tpu_custom_call.1} parent=1 // pred_check_branch
      %13 = sbr.rel (0) target = $region5
    $region4: #{tpu_custom_call.1} parent=1 // pred_region
      _
    $region5: #{tpu_custom_call.1} parent=1 // pred_fallthru
      _
    // Predicated region
    $region6: #{tpu_custom_call.1} parent=1 // pred_check
      _
    $region7: #{tpu_custom_call.1} parent=1 // pred_check_branch
      %15 = sbr.rel (0) target = $region9
    $region8: #{tpu_custom_call.1} parent=1 // pred_region
      %s17 = ssub.s32 64, 64
      %18 = vsyncadd [#allocation4], %s17
      %s20 = sshll.u32 [#allocation3], 4
      %s21 = int_to_ptr.vmem [resolvable:$true] %s20
      %23 = dma.hbm_to_vmem [thread:$0]  %s1, 64, %s21, [#allocation4]
    $region9: #{tpu_custom_call.1} parent=1 // pred_fallthru
      _
    // Predicated region
    $region10: #{tpu_custom_call.1} parent=1 // pred_check
      _
    $region11: #{tpu_custom_call.1} parent=1 // pred_check_branch
      %25 = sbr.rel (0) target = $region13
    $region12: #{tpu_custom_call.1} parent=1 // pred_region
      _
    $region13: #{tpu_custom_call.1} parent=1 // pred_fallthru
      _
    // Predicated region
    $region14: #{tpu_custom_call.1} parent=1 // pred_check
      _
    $region15: #{tpu_custom_call.1} parent=1 // pred_check_branch
      %27 = sbr.rel (0) target = $region17
    $region16: #{tpu_custom_call.1} parent=1 // pred_region
      _
    $region17: #{tpu_custom_call.1} parent=1 // pred_fallthru
      _
    // Predicated region
    $region18: #{tpu_custom_call.1} parent=1 // pred_check
      _
    $region19: #{tpu_custom_call.1} parent=1 // pred_check_branch
      %29 = sbr.rel (0) target = $region21
    $region20: #{tpu_custom_call.1} parent=1 // pred_region
      _
    $region21: #{tpu_custom_call.1} parent=1 // pred_fallthru
      _
    // Predicated region
    $region22: #{tpu_custom_call.1} parent=1 // pred_check
      _
    $region23: #{tpu_custom_call.1} parent=1 // pred_check_branch
      %31 = sbr.rel (0) target = $region25
    $region24: #{tpu_custom_call.1} parent=1 // pred_region
      %32 = dma.done [#allocation4], 64
    $region25: #{tpu_custom_call.1} parent=1 // pred_fallthru
      _
    %v33 = vld [vmem:[%s0] sm:$0xff]
    %v34 = vld [vmem:[#allocation3] sm:$0xf]
    %vm35 = vcmask 31744
    %v37 = vsel %vm35, %v33, 0
    %vm39 = vcmask 1043456
    %v41 = vsel %vm39, %v34, 0
    %43 = vmatprep.subr.mxu0 0.0
    %44 = vmatpush1.msra.mxu0 %v41
    %45 = vmatprep.subr.mxu0 0.0
    %46 = vmatpush1.msra.mxu0 0.0
    %47 = vmatprep.subr.mxu0 0.0
    %48 = vmatpush1.msra.mxu0 0.0
    %49 = vmatprep.subr.mxu0 0.0
    %50 = vmatpush1.msra.mxu0 0.0
    %51 = vmatprep.subr.mxu0 0.0
    %52 = vmatpush1.msra.mxu0 0.0
    %53 = vmatprep.subr.mxu0 0.0
    %54 = vmatpush1.msra.mxu0 0.0
    %55 = vmatprep.subr.mxu0 0.0
    %56 = vmatpush1.msra.mxu0 0.0
    %57 = vmatprep.subr.mxu0 0.0
    %58 = vmatpush1.msra.mxu0 0.0
    %59 = vmatprep.subr.mxu0 0.0
    %60 = vmatpush1.msra.mxu0 0.0
    %61 = vmatprep.subr.mxu0 0.0
    %62 = vmatpush1.msra.mxu0 0.0
    %63 = vmatprep.subr.mxu0 0.0
    %64 = vmatpush1.msra.mxu0 0.0
    %65 = vmatprep.subr.mxu0 0.0
    %66 = vmatpush1.msra.mxu0 0.0
    %67 = vmatprep.subr.mxu0 0.0
    %68 = vmatpush1.msra.mxu0 0.0
    %69 = vmatprep.subr.mxu0 0.0
    %70 = vmatpush1.msra.mxu0 0.0
    %71 = vmatprep.subr.mxu0 0.0
    %72 = vmatpush1.msra.mxu0 0.0
    %73 = vmatprep.subr.mxu0 0.0
    %74 = vmatpush1.msra.mxu0 0.0
    %75 = vmatprep.subr.mxu0 0.0
    %76 = vmatpush1.msra.mxu0 0.0
    %77 = vmatprep.subr.mxu0 0.0
    %78 = vmatpush1.msra.mxu0 0.0
    %79 = vmatprep.subr.mxu0 0.0
    %80 = vmatpush1.msra.mxu0 0.0
    %81 = vmatprep.subr.mxu0 0.0
    %82 = vmatpush1.msra.mxu0 0.0
    %83 = vmatprep.subr.mxu0 0.0
    %84 = vmatpush1.msra.mxu0 0.0
    %85 = vmatprep.subr.mxu0 0.0
    %86 = vmatpush1.msra.mxu0 0.0
    %87 = vmatprep.subr.mxu0 0.0
    %88 = vmatpush1.msra.mxu0 0.0
    %89 = vmatprep.subr.mxu0 0.0
    %90 = vmatpush1.msra.mxu0 0.0
    %91 = vmatprep.subr.mxu0 0.0
    %92 = vmatpush1.msra.mxu0 0.0
    %93 = vmatprep.subr.mxu0 0.0
    %94 = vmatpush1.msra.mxu0 0.0
    %95 = vmatprep.subr.mxu0 0.0
    %96 = vmatpush1.msra.mxu0 0.0
    %97 = vmatprep.subr.mxu0 0.0
    %98 = vmatpush1.msra.mxu0 0.0
    %99 = vmatprep.subr.mxu0 0.0
    %100 = vmatpush1.msra.mxu0 0.0
    %101 = vmatprep.subr.mxu0 0.0
    %102 = vmatpush1.msra.mxu0 0.0
    %103 = vmatprep.subr.mxu0 0.0
    %104 = vmatpush1.msra.mxu0 0.0
    %105 = vmatprep.subr.mxu0 0.0
    %106 = vmatpush1.msra.mxu0 0.0
    %107 = vmatprep.mubr.f32.mxu0 0.0
    %108 = vmatmul.mubr.f32.gmra.mrb[0].mxu0 %v37
    %v109 = vpop.f32.mrb[0].mxu0
    %v110 = vadd.f32 0.0, %v109
    %v111 = vpop.f32.mrb[0].mxu0
    %112 = vdwg.mxu0
    %113 = vst [vmem:[#allocation2] sm:$0xff] %v110
    %v114 = vld [vmem:[%s2] sm:$0x1]
    %v115 = vld [vmem:[#allocation2] sm:$0xff]
    %v117 = vlaneseq
    %v118 = vshrl.u32 %v117, 7
    %v119 = vsub.s32 0, %v118
    %v120 = vrot.slane %v114, %v119
    %v122 = vadd.f32 %v115, %v120
    %v123 = vand.u32 2147483647, %v122
    %vm124 = vcmp.le.f32.partialorder %v123, 0.7853982
    %vm125 = vcmp.lt.s32.totalorder %v122, 0
    %v126 = vand.u32 %v122, 2139095040
    %v127 = vshrl.u32 %v126, 23
    %v128 = vsub.s32 %v127, 127
    %v129 = vand.u32 2147483647, %v122
    %v130 = vand.u32 %v129, 8388607
    %v131 = vor.u32 %v130, 8388608
    %v132 = vsub.s32 0, %v131
    %v133 = vadd.s32 %v128, 1
    %vm134 = vcmp.gt.s32.totalorder %v133, 0
    %v135 = vsel %vm134, %v133, 0
    %v136 = vshrl.u32 %v135, 5
    %v137 = vand.u32 %v135, 31
    %v138 = vsub.s32 32, %v137
    %v139 = vshrl.u32 683565275, %v138
    %v140 = vshll.u32 683565275, %v137
    %v141 = vshrl.u32 2475754826, %v138
    %v142 = vor.u32 %v140, %v141
    %v143 = vshll.u32 2475754826, %v137
    %v144 = vshrl.u32 2131351028, %v138
    %v145 = vor.u32 %v143, %v144
    %v146 = vshll.u32 2131351028, %v137
    %v147 = vshrl.u32 2102212464, %v138
    %v148 = vor.u32 %v146, %v147
    %v149 = vshll.u32 2102212464, %v137
    %v150 = vshrl.u32 920167782, %v138
    %v151 = vor.u32 %v149, %v150
    %v152 = vshll.u32 920167782, %v137
    %v153 = vshrl.u32 1326507024, %v138
    %v154 = vor.u32 %v152, %v153
    %vm155 = vcmp.lt.s32.totalorder %v136, 1
    %vm156 = vcmp.lt.s32.totalorder %v136, 2
    %vm157 = vcmp.lt.s32.totalorder %v136, 3
    %vm158 = vcmp.lt.s32.totalorder %v136, 4
    %v159 = vsel %vm155, %v139, %v142
    %v160 = vsel %vm158, %v148, 2102212464
    %v161 = vsel %vm157, %v145, %v160
    %v162 = vsel %vm156, %v159, %v161
    %v163 = vsel %vm155, %v142, %v145
    %v164 = vsel %vm158, %v151, 920167782
    %v165 = vsel %vm157, %v148, %v164
    %v166 = vsel %vm156, %v163, %v165
    %v167 = vsel %vm155, %v145, %v148
    %v168 = vsel %vm158, %v154, 1326507024
    %v169 = vsel %vm157, %v151, %v168
    %v170 = vsel %vm156, %v167, %v169
    %v171 = vshll.u32 %v131, 8
    %v172 = vmul.u32.u64.compose %v171, %v170
    %v173 = vextract.low.u32 %v172
    %v174 = vextract.high.u32 %v172
    %v175 = vmul.u32.u64.compose %v171, %v166
    %v176 = vextract.low.u32 %v175
    %v177 = vextract.high.u32 %v175
    %v178 = vmul.u32 %v171, %v162
    %v179 = vadd.s32 %v174, %v176
    %vm180 = vc.u32 %v174, %v176
    %v181 = vadd.s32 %v177, 1
    %v182 = vsel %vm180, %v181, %v177
    %v183 = vadd.s32 %v178, %v182
    %v184 = vadd.s32 %v183, 536870912
    %v185 = vshrl.u32 %v184, 30
    %v186 = vshll.u32 %v185, 30
    %v187 = vsub.s32 %v183, %v186
    %vm188 = vcmp.lt.s32.totalorder %v187, 0
    %v189 = vsub.s32 0, %v187
    %v190 = vsel %vm188, %v189, %v187
    %v191 = vclz %v190
    %v192 = vsub.s32 %v191, 2
    %vm193 = vcmp.gt.s32.totalorder 0, %v192
    %v194 = vsel %vm193, 0, %v192
    %v195 = vsub.s32 32, %v194
    %v196 = vshll.u32 %v187, %v194
    %v197 = vshrl.u32 %v179, %v195
    %v198 = vor.u32 %v196, %v197
    %v199 = vsub.s32 4294967266, %v194
    %v200 = vadd.s32 %v199, 127
    %v201 = vshll.u32 %v200, 23
    %v202 = vor.u32 4788187, %v201
    %v203 = vand.u32 2147483647, %v202
    %v205 = vcvt.s32.f32 %v198
    %v206 = vmul.f32 %v205, %v203
    %v207 = vxor.u32 %v206, 2147483648
    %v208 = vsel %vm125, %v207, %v206
    %v209 = vsub.s32 4, %v185
    %v210 = vsel %vm125, %v209, %v185
    %v211 = vsel %vm124, %v122, %v208
    %v212 = vsel %vm124, 0, %v210
    %v213 = vcosq.f32.pop %v211
    %v214 = vsinq.f32.pop %v211
    %vm215 = vweird.f32 %v122
    %v216 = vand.u32 %v212, 3
    %vm217 = vcmp.lt.s32.totalorder %v216, 2
    %vm218 = vcmp.eq.s32.totalorder %v216, 0
    %v219 = vxor.u32 %v214, 2147483648
    %v220 = vsel %vm218, %v213, %v219
    %vm221 = vcmp.eq.s32.totalorder %v216, 2
    %v222 = vxor.u32 %v213, 2147483648
    %v223 = vsel %vm221, %v222, %v214
    %v224 = vsel %vm217, %v220, %v223
    %v225 = vsel %vm215, nan, %v224
    %v226 = vand.u32 2147483647, %v122
    %vm227 = vcmp.le.f32.partialorder %v226, 0.7853982
    %vm228 = vcmp.lt.s32.totalorder %v122, 0
    %v229 = vand.u32 %v122, 2139095040
    %v230 = vshrl.u32 %v229, 23
    %v231 = vsub.s32 %v230, 127
    %v232 = vand.u32 2147483647, %v122
    %v233 = vand.u32 %v232, 8388607
    %v234 = vor.u32 %v233, 8388608
    %v235 = vsub.s32 0, %v234
    %v236 = vadd.s32 %v231, 1
    %vm237 = vcmp.gt.s32.totalorder %v236, 0
    %v238 = vsel %vm237, %v236, 0
    %v239 = vshrl.u32 %v238, 5
    %v240 = vand.u32 %v238, 31
    %v241 = vsub.s32 32, %v240
    %v242 = vshrl.u32 683565275, %v241
    %v243 = vshll.u32 683565275, %v240
    %v244 = vshrl.u32 2475754826, %v241
    %v245 = vor.u32 %v243, %v244
    %v246 = vshll.u32 2475754826, %v240
    %v247 = vshrl.u32 2131351028, %v241
    %v248 = vor.u32 %v246, %v247
    %v249 = vshll.u32 2131351028, %v240
    %v250 = vshrl.u32 2102212464, %v241
    %v251 = vor.u32 %v249, %v250
    %v252 = vshll.u32 2102212464, %v240
    %v253 = vshrl.u32 920167782, %v241
    %v254 = vor.u32 %v252, %v253
    %v255 = vshll.u32 920167782, %v240
    %v256 = vshrl.u32 1326507024, %v241
    %v257 = vor.u32 %v255, %v256
    %vm258 = vcmp.lt.s32.totalorder %v239, 1
    %vm259 = vcmp.lt.s32.totalorder %v239, 2
    %vm260 = vcmp.lt.s32.totalorder %v239, 3
    %vm261 = vcmp.lt.s32.totalorder %v239, 4
    %v262 = vsel %vm258, %v242, %v245
    %v263 = vsel %vm261, %v251, 2102212464
    %v264 = vsel %vm260, %v248, %v263
    %v265 = vsel %vm259, %v262, %v264
    %v266 = vsel %vm258, %v245, %v248
    %v267 = vsel %vm261, %v254, 920167782
    %v268 = vsel %vm260, %v251, %v267
    %v269 = vsel %vm259, %v266, %v268
    %v270 = vsel %vm258, %v248, %v251
    %v271 = vsel %vm261, %v257, 1326507024
    %v272 = vsel %vm260, %v254, %v271
    %v273 = vsel %vm259, %v270, %v272
    %v274 = vshll.u32 %v234, 8
    %v275 = vmul.u32.u64.compose %v274, %v273
    %v276 = vextract.low.u32 %v275
    %v277 = vextract.high.u32 %v275
    %v278 = vmul.u32.u64.compose %v274, %v269
    %v279 = vextract.low.u32 %v278
    %v280 = vextract.high.u32 %v278
    %v281 = vmul.u32 %v274, %v265
    %v282 = vadd.s32 %v277, %v279
    %vm283 = vc.u32 %v277, %v279
    %v284 = vadd.s32 %v280, 1
    %v285 = vsel %vm283, %v284, %v280
    %v286 = vadd.s32 %v281, %v285
    %v287 = vadd.s32 %v286, 536870912
    %v288 = vshrl.u32 %v287, 30
    %v289 = vshll.u32 %v288, 30
    %v290 = vsub.s32 %v286, %v289
    %vm291 = vcmp.lt.s32.totalorder %v290, 0
    %v292 = vsub.s32 0, %v290
    %v293 = vsel %vm291, %v292, %v290
    %v294 = vclz %v293
    %v295 = vsub.s32 %v294, 2
    %vm296 = vcmp.gt.s32.totalorder 0, %v295
    %v297 = vsel %vm296, 0, %v295
    %v298 = vsub.s32 32, %v297
    %v299 = vshll.u32 %v290, %v297
    %v300 = vshrl.u32 %v282, %v298
    %v301 = vor.u32 %v299, %v300
    %v302 = vsub.s32 4294967266, %v297
    %v303 = vadd.s32 %v302, 127
    %v304 = vshll.u32 %v303, 23
    %v305 = vor.u32 4788187, %v304
    %v306 = vand.u32 2147483647, %v305
    %v308 = vcvt.s32.f32 %v301
    %v309 = vmul.f32 %v308, %v306
    %v310 = vxor.u32 %v309, 2147483648
    %v311 = vsel %vm228, %v310, %v309
    %v312 = vsub.s32 4, %v288
    %v313 = vsel %vm228, %v312, %v288
    %v314 = vsel %vm227, %v122, %v311
    %v315 = vsel %vm227, 0, %v313
    %v316 = vcosq.f32.pop %v314
    %v317 = vsinq.f32.pop %v314
    %vm318 = vweird.f32 %v122
    %v319 = vadd.s32 %v315, 3
    %v320 = vand.u32 %v319, 3
    %vm321 = vcmp.lt.s32.totalorder %v320, 2
    %vm322 = vcmp.eq.s32.totalorder %v320, 0
    %v323 = vxor.u32 %v317, 2147483648
    %v324 = vsel %vm322, %v316, %v323
    %vm325 = vcmp.eq.s32.totalorder %v320, 2
    %v326 = vxor.u32 %v316, 2147483648
    %v327 = vsel %vm325, %v326, %v317
    %v328 = vsel %vm321, %v324, %v327
    %v329 = vsel %vm318, nan, %v328
    %v330 = vadd.f32 %v225, %v225
    %v331 = vld [vmem:[%s3] sm:$0x1]
    %v332 = vlaneseq
    %v333 = vshrl.u32 %v332, 7
    %v334 = vsub.s32 0, %v333
    %v335 = vrot.slane %v331, %v334
    %v336 = vmul.f32 %v335, %v225
    %v337 = vadd.f32 %v336, 0.0
    %v338 = vld [vmem:[%s4] sm:$0x1]
    %v339 = vlaneseq
    %v340 = vshrl.u32 %v339, 7
    %v341 = vsub.s32 0, %v340
    %v342 = vrot.slane %v338, %v341
    %v343 = vmul.f32 %v342, %v329
    %v344 = vadd.f32 %v337, %v343
    %v345 = vmul.f32 %v330, %v225
    %v346 = vsub.f32 %v345, 1.0
    %v347 = vmul.f32 %v330, %v329
    %v348 = vld [vmem:[%s3 + $0x1] sm:$0x1]
    %v349 = vlaneseq
    %v350 = vshrl.u32 %v349, 7
    %v351 = vsub.s32 0, %v350
    %v352 = vrot.slane %v348, %v351
    %v353 = vmul.f32 %v352, %v346
    %v354 = vadd.f32 %v344, %v353
    %v355 = vld [vmem:[%s4 + $0x1] sm:$0x1]
    %v356 = vlaneseq
    %v357 = vshrl.u32 %v356, 7
    %v358 = vsub.s32 0, %v357
    %v359 = vrot.slane %v355, %v358
    %v360 = vmul.f32 %v359, %v347
    %v361 = vadd.f32 %v354, %v360
    %v362 = vmul.f32 %v330, %v346
    %v363 = vsub.f32 %v362, %v225
    %v364 = vmul.f32 %v330, %v347
    %v365 = vsub.f32 %v364, %v329
    %v366 = vld [vmem:[%s3 + $0x2] sm:$0x1]
    %v367 = vlaneseq
    %v368 = vshrl.u32 %v367, 7
    %v369 = vsub.s32 0, %v368
    %v370 = vrot.slane %v366, %v369
    %v371 = vmul.f32 %v370, %v363
    %v372 = vadd.f32 %v361, %v371
    %v373 = vld [vmem:[%s4 + $0x2] sm:$0x1]
    %v374 = vlaneseq
    %v375 = vshrl.u32 %v374, 7
    %v376 = vsub.s32 0, %v375
    %v377 = vrot.slane %v373, %v376
    %v378 = vmul.f32 %v377, %v365
    %v379 = vadd.f32 %v372, %v378
    %v380 = vmul.f32 %v330, %v363
    %v381 = vsub.f32 %v380, %v346
    %v382 = vmul.f32 %v330, %v365
    %v383 = vsub.f32 %v382, %v347
    %v384 = vld [vmem:[%s3 + $0x3] sm:$0x1]
    %v385 = vlaneseq
    %v386 = vshrl.u32 %v385, 7
    %v387 = vsub.s32 0, %v386
    %v388 = vrot.slane %v384, %v387
    %v389 = vmul.f32 %v388, %v381
    %v390 = vadd.f32 %v379, %v389
    %v391 = vld [vmem:[%s4 + $0x3] sm:$0x1]
    %v392 = vlaneseq
    %v393 = vshrl.u32 %v392, 7
    %v394 = vsub.s32 0, %v393
    %v395 = vrot.slane %v391, %v394
    %v396 = vmul.f32 %v395, %v383
    %v397 = vadd.f32 %v390, %v396
    %v398 = vmul.f32 %v330, %v381
    %v399 = vsub.f32 %v398, %v363
    %v400 = vmul.f32 %v330, %v383
    %v401 = vsub.f32 %v400, %v365
    %v402 = vld [vmem:[%s3 + $0x4] sm:$0x1]
    %v403 = vlaneseq
    %v404 = vshrl.u32 %v403, 7
    %v405 = vsub.s32 0, %v404
    %v406 = vrot.slane %v402, %v405
    %v407 = vmul.f32 %v406, %v399
    %v408 = vadd.f32 %v397, %v407
    %v409 = vld [vmem:[%s4 + $0x4] sm:$0x1]
    %v410 = vlaneseq
    %v411 = vshrl.u32 %v410, 7
    %v412 = vsub.s32 0, %v411
    %v413 = vrot.slane %v409, %v412
    %v414 = vmul.f32 %v413, %v401
    %v415 = vadd.f32 %v408, %v414
    %v416 = vmul.f32 %v330, %v399
    %v417 = vsub.f32 %v416, %v381
    %v418 = vmul.f32 %v330, %v401
    %v419 = vsub.f32 %v418, %v383
    %v420 = vld [vmem:[%s3 + $0x5] sm:$0x1]
    %v421 = vlaneseq
    %v422 = vshrl.u32 %v421, 7
    %v423 = vsub.s32 0, %v422
    %v424 = vrot.slane %v420, %v423
    %v425 = vmul.f32 %v424, %v417
    %v426 = vadd.f32 %v415, %v425
    %v427 = vld [vmem:[%s4 + $0x5] sm:$0x1]
    %v428 = vlaneseq
    %v429 = vshrl.u32 %v428, 7
    %v430 = vsub.s32 0, %v429
    %v431 = vrot.slane %v427, %v430
    %v432 = vmul.f32 %v431, %v419
    %v433 = vadd.f32 %v426, %v432
    %v434 = vmul.f32 %v330, %v417
    %v435 = vsub.f32 %v434, %v399
    %v436 = vmul.f32 %v330, %v419
    %v437 = vsub.f32 %v436, %v401
    %v438 = vld [vmem:[%s3 + $0x6] sm:$0x1]
    %v439 = vlaneseq
    %v440 = vshrl.u32 %v439, 7
    %v441 = vsub.s32 0, %v440
    %v442 = vrot.slane %v438, %v441
    %v443 = vmul.f32 %v442, %v435
    %v444 = vadd.f32 %v433, %v443
    %v445 = vld [vmem:[%s4 + $0x6] sm:$0x1]
    %v446 = vlaneseq
    %v447 = vshrl.u32 %v446, 7
    %v448 = vsub.s32 0, %v447
    %v449 = vrot.slane %v445, %v448
    %v450 = vmul.f32 %v449, %v437
    %v451 = vadd.f32 %v444, %v450
    %v452 = vmul.f32 %v330, %v435
    %v453 = vsub.f32 %v452, %v417
    %v454 = vmul.f32 %v330, %v437
    %v455 = vsub.f32 %v454, %v419
    %v456 = vld [vmem:[%s3 + $0x7] sm:$0x1]
    %v457 = vlaneseq
    %v458 = vshrl.u32 %v457, 7
    %v459 = vsub.s32 0, %v458
    %v460 = vrot.slane %v456, %v459
    %v461 = vmul.f32 %v460, %v453
    %v462 = vadd.f32 %v451, %v461
    %v463 = vld [vmem:[%s4 + $0x7] sm:$0x1]
    %v464 = vlaneseq
    %v465 = vshrl.u32 %v464, 7
    %v466 = vsub.s32 0, %v465
    %v467 = vrot.slane %v463, %v466
    %v468 = vmul.f32 %v467, %v455
    %v469 = vadd.f32 %v462, %v468
    %470 = vst [vmem:[#allocation6] sm:$0xff] %v469
    // Predicated region
    $region26: #{tpu_custom_call.1} parent=1 // pred_check
      _
    $region27: #{tpu_custom_call.1} parent=1 // pred_check_branch
      %472 = sbr.rel (0) target = $region29
    $region28: #{tpu_custom_call.1} parent=1 // pred_region
      %s474 = ssub.s32 128, 128
      %475 = vsyncadd [#allocation5], %s474
      %s477 = sshll.u32 [#allocation6], 4
      %s478 = int_to_ptr.vmem [resolvable:$true] %s477
      %480 = dma.vmem_to_hbm [thread:$0]  %s478, 128, %s5, [#allocation5]
    $region29: #{tpu_custom_call.1} parent=1 // pred_fallthru
      _
    // Predicated region
    $region30: #{tpu_custom_call.1} parent=1 // pred_check
      _
    $region31: #{tpu_custom_call.1} parent=1 // pred_check_branch
      %482 = sbr.rel (0) target = $region33
    $region32: #{tpu_custom_call.1} parent=1 // pred_region
      %483 = dma.done [#allocation5], 128
    $region33: #{tpu_custom_call.1} parent=1 // pred_fallthru
      _
    %484 = vsyncpa [#allocation4], 1
    %485 = vsyncpa [#allocation5], 1

</llo_original>
